<compile_context>
chip_gen: v5e
topology: v5e:2x2
jax: 0.10.0
libtpu: 0.0.40
codegen_flags: <defaults>
</compile_context>

<pallas_src>
import jax
import jax.numpy as jnp
from jax import lax
from jax.experimental import pallas as pl
from jax.experimental.pallas import tpu as pltpu

EPS = 1e-5          # nn.BatchNorm2d default
NEG_SLOPE = 0.01    # nn.LeakyReLU default
LANE = 128
SUBLANE = 8


def _round_up(x, m):
    return (x + m - 1) // m * m


def _vmem_limit_bytes():
    # Physical VMEM: 128 MiB on v5e/v6e, 64 MiB on v7x.  Scoped defaults are far
    # lower (16/32 MiB), so raise explicitly but leave compiler headroom.
    try:
        cap = pltpu.get_tpu_info().vmem_capacity_bytes
    except Exception:
        cap = 64 * 1024 * 1024
    return int(min(cap * 3 // 4, 96 * 1024 * 1024))


# --------------- phase 1: conv-as-matmul (MXU) + per-tile channel sum / sumsq ---------------
def matmul_stats_kernel(p_ref, w_ref, y_ref, csum_ref, csumsq_ref):
    # p_ref:      [TM, Kp]     bf16 im2col patches tile
    # w_ref:      [Kp, Cp]     bf16 weights (constant block index; single-buffered)
    # y_ref:      [TM, Cp]     bf16 pre-BN conv output tile
    # csum_ref:   [1, 1, Cp]   f32 per-tile partial sum   (disjoint per grid step)
    # csumsq_ref: [1, 1, Cp]   f32 per-tile partial sumsq (disjoint per grid step)
    y = jnp.dot(p_ref[...], w_ref[...], preferred_element_type=jnp.float32)
    # Stats from the f32 accumulator BEFORE narrowing the stored tensor to bf16.
    csum_ref[...] = jnp.sum(y, axis=0, keepdims=True)[None]
    csumsq_ref[...] = jnp.sum(y * y, axis=0, keepdims=True)[None]
    y_ref[...] = y.astype(y_ref.dtype)


# --------------- phase 2: fused BN affine + LeakyReLU (pure HBM stream, parallel) -----------
def bn_lrelu_kernel(y_ref, scale_ref, shift_ref, o_ref):
    z = y_ref[...].astype(jnp.float32) * scale_ref[...] + shift_ref[...]
    o_ref[...] = jnp.where(z >= 0, z, NEG_SLOPE * z).astype(o_ref.dtype)


def conv_block(x_nchw, weight, gamma, beta):
    """ConvBlock forward. x_nchw: [N, Cin, H, W], weight: [Cout, Cin, 3, 3]."""
    N, Cin, H, W = x_nchw.shape
    Cout = weight.shape[0]
    KH = KW = 3
    stride = 2
    pad = 1
    Hout = (H + 2 * pad - KH) // stride + 1
    Wout = (W + 2 * pad - KW) // stride + 1

    M = N * Hout * Wout
    K = KH * KW * Cin

    # Lane-pad only when the HBM bloat is modest (<= 25%); a full-extent ragged
    # last block dim is legal and, in the mem-bound regime, cheaper than the
    # padded bytes (MXU-internal padding is free, HBM padding is not).
    def lane_pad(n):
        npad = _round_up(n, LANE)
        return npad if npad * 4 <= n * 5 else n
    Kp = lane_pad(K)
    Cp = lane_pad(Cout)

    vmem_limit = _vmem_limit_bytes()
    budget = vmem_limit // 2                      # headroom for Mosaic scratch

    # Phase-1 tile rows: double-buffered bf16 patches + bf16 y, plus resident weights.
    per_row1 = 2 * 2 * Kp + 2 * 2 * Cp
    w_bytes = Kp * Cp * 2                         # single-buffered weight block
    tm = min(1024, max(SUBLANE, (budget - w_bytes) // per_row1))
    tm = min(tm, _round_up(M, SUBLANE))
    TM = max(SUBLANE, tm - tm % SUBLANE)

    # Phase-2 tile rows: pure HBM stream — bigger is better; keep it a multiple
    # of TM so both tile sizes divide the same padded M.
    per_row2 = 2 * Cp * (2 + 4)                   # bf16 in + f32 out, double-buffered
    tm2 = min(2048, max(TM, budget // per_row2))
    tm2 = max(TM, min(tm2, _round_up(M, SUBLANE)))
    TM2 = TM * max(1, tm2 // TM)

    Mpad = _round_up(M, TM2)
    grid1 = Mpad // TM
    grid2 = Mpad // TM2

    # --- glue: im2col in plain JAX, emitted in bf16, single pad to (Mpad, Kp) ---
    x = jnp.transpose(x_nchw, (0, 2, 3, 1)).astype(jnp.bfloat16)        # NHWC
    xp = jnp.pad(x, ((0, 0), (pad, pad), (pad, pad), (0, 0)))
    taps = [xp[:, kh:kh + stride * Hout:stride, kw:kw + stride * Wout:stride, :]
            for kh in range(KH) for kw in range(KW)]
    patches = jnp.concatenate(taps, axis=-1).reshape(M, K)              # (kh,kw,cin)
    if (Mpad, Kp) != (M, K):
        patches = jnp.pad(patches, ((0, Mpad - M), (0, Kp - K)))

    # weight [Cout,Cin,kh,kw] -> [kh,kw,Cin,Cout] -> [K,Cout] (-> pad), bf16
    w_mat = jnp.transpose(weight, (2, 3, 1, 0)).reshape(K, Cout).astype(jnp.bfloat16)
    if (Kp, Cp) != (K, Cout):
        w_mat = jnp.pad(w_mat, ((0, Kp - K), (0, Cp - Cout)))

    flops1 = 2 * Mpad * Kp * Cp
    bytes1 = (Mpad * Kp * 2 + Kp * Cp * 2          # patches + weights (bf16)
              + Mpad * Cp * 2                      # y (bf16)
              + 2 * grid1 * Cp * 4)                # per-tile stats (f32)

    y, csum, csumsq = pl.pallas_call(
        matmul_stats_kernel,
        out_shape=(jax.ShapeDtypeStruct((Mpad, Cp), jnp.bfloat16),
                   jax.ShapeDtypeStruct((grid1, 1, Cp), jnp.float32),
                   jax.ShapeDtypeStruct((grid1, 1, Cp), jnp.float32)),
        grid=(grid1,),
        in_specs=[pl.BlockSpec((TM, Kp), lambda i: (i, 0)),
                  pl.BlockSpec((Kp, Cp), lambda i: (0, 0),
                               pipeline_mode=pl.Buffered(1))],
        out_specs=(pl.BlockSpec((TM, Cp), lambda i: (i, 0)),
                   pl.BlockSpec((1, 1, Cp), lambda i: (i, 0, 0)),
                   pl.BlockSpec((1, 1, Cp), lambda i: (i, 0, 0))),
        compiler_params=pltpu.CompilerParams(
            # per-tile partial sums -> no resident accumulator -> fully parallel
            dimension_semantics=("parallel",),
            vmem_limit_bytes=vmem_limit),
        cost_estimate=pl.CostEstimate(flops=flops1, transcendentals=0,
                                      bytes_accessed=bytes1),
    )(patches, w_mat)

    # --- tiny per-channel BN fold (plain JAX on [Cp] vectors) ---
    csum_t = jnp.sum(csum, axis=(0, 1))           # padded rows contribute exactly 0
    csumsq_t = jnp.sum(csumsq, axis=(0, 1))
    mean = csum_t / M
    var = csumsq_t / M - mean * mean              # biased variance (training-mode BN)
    gamma_p = gamma.astype(jnp.float32)
    beta_p = beta.astype(jnp.float32)
    if Cp != Cout:
        gamma_p = jnp.pad(gamma_p, (0, Cp - Cout), constant_values=1.0)
        beta_p = jnp.pad(beta_p, (0, Cp - Cout))
    scale = gamma_p * lax.rsqrt(var + EPS)
    shift = beta_p - mean * scale
    scale2 = scale.reshape(1, Cp)
    shift2 = shift.reshape(1, Cp)

    bytes2 = Mpad * Cp * (2 + 4) + 2 * Cp * 4
    out = pl.pallas_call(
        bn_lrelu_kernel,
        out_shape=jax.ShapeDtypeStruct((Mpad, Cp), jnp.float32),
        grid=(grid2,),
        in_specs=[pl.BlockSpec((TM2, Cp), lambda i: (i, 0)),
                  pl.BlockSpec((1, Cp), lambda i: (0, 0)),
                  pl.BlockSpec((1, Cp), lambda i: (0, 0))],
        out_specs=pl.BlockSpec((TM2, Cp), lambda i: (i, 0)),
        compiler_params=pltpu.CompilerParams(
            dimension_semantics=("parallel",),
            vmem_limit_bytes=vmem_limit),
        cost_estimate=pl.CostEstimate(flops=2 * Mpad * Cp, transcendentals=0,
                                      bytes_accessed=bytes2),
    )(y, scale2, shift2)

    out = out[:M, :Cout].reshape(N, Hout, Wout, Cout)   # drop M / channel padding
    return jnp.transpose(out, (0, 3, 1, 2))             # back to NCHW


def reference_conv_block(x_nchw, weight, gamma, beta):
    """Pure-JAX f32 reference (same semantics) for a correctness sanity check."""
    y = lax.conv_general_dilated(
        x_nchw, weight, window_strides=(2, 2), padding=((1, 1), (1, 1)),
        dimension_numbers=("NCHW", "OIHW", "NCHW"))
    mean = jnp.mean(y, axis=(0, 2, 3), keepdims=True)
    var = jnp.mean((y - mean) ** 2, axis=(0, 2, 3), keepdims=True)
    y_hat = (y - mean) * lax.rsqrt(var + EPS)
    z = y_hat * gamma.reshape(1, -1, 1, 1) + beta.reshape(1, -1, 1, 1)
    return jnp.where(z >= 0, z, NEG_SLOPE * z)


if __name__ == "__main__":
    key = jax.random.PRNGKey(0)
    kx, kw = jax.random.split(key)

    N, Cin, H, W = 2, 4, 16, 16
    Cout = 8

    x = jax.random.normal(kx, (N, Cin, H, W), dtype=jnp.float32)
    weight = 0.1 * jax.random.normal(kw, (Cout, Cin, 3, 3), dtype=jnp.float32)
    gamma = jnp.ones((Cout,), dtype=jnp.float32)   # BatchNorm2d default affine init
    beta = jnp.zeros((Cout,), dtype=jnp.float32)

    out = conv_block(x, weight, gamma, beta)
    out = jax.block_until_ready(out)

    ref = jax.block_until_ready(reference_conv_block(x, weight, gamma, beta))
    assert out.shape == (N, Cout, H // 2, W // 2), out.shape
    # tolerance covers bf16 MXU inputs + bf16 y intermediate (f32 stats / epilogue)
    max_err = float(jnp.max(jnp.abs(out - ref)))
    assert jnp.allclose(out, ref, rtol=3e-2, atol=3e-2), max_err

    print("KERNEL_OK")
</pallas_src>

<mosaic_0001>
module attributes {stable_mosaic.version = 11 : i64} {
  func.func @matmul_stats_kernel(%arg0: i32, %arg1: memref<128x36xbf16, #tpu.memory_space<vmem>>, %arg2: memref<36x8xbf16, #tpu.memory_space<vmem>>, %arg3: memref<128x8xbf16, #tpu.memory_space<vmem>>, %arg4: memref<1x1x8xf32, #tpu.memory_space<vmem>>, %arg5: memref<1x1x8xf32, #tpu.memory_space<vmem>>) attributes {dimension_semantics = [#tpu.dimension_semantics<parallel>], iteration_bounds = array<i64: 1>, scalar_prefetch = 0 : i64, scratch_operands = 0 : i64, tpu.core_type = #tpu.core_type<tc>, window_params = [{transform_indices = @transform_0, window_bounds = array<i64: 128, 36>}, {pipeline_mode = #tpu.pipeline_mode<synchronous>, transform_indices = @transform_1, window_bounds = array<i64: 36, 8>}, {transform_indices = @transform_2, window_bounds = array<i64: 128, 8>}, {transform_indices = @transform_3, window_bounds = array<i64: 1, 1, 8>}, {transform_indices = @transform_4, window_bounds = array<i64: 1, 1, 8>}]} {
    %c0 = arith.constant 0 : index
    %c0_0 = arith.constant 0 : index
    %0 = vector.load %arg1[%c0, %c0_0] : memref<128x36xbf16, #tpu.memory_space<vmem>>, vector<128x36xbf16>
    %c0_1 = arith.constant 0 : index
    %c0_2 = arith.constant 0 : index
    %1 = vector.load %arg2[%c0_1, %c0_2] : memref<36x8xbf16, #tpu.memory_space<vmem>>, vector<36x8xbf16>
    %cst = arith.constant dense<0.000000e+00> : vector<128x8xf32>
    %2 = tpu.matmul %0, %1, %cst {dimension_numbers = #tpu.dot_dimension_numbers<[1], [0], [0], [1], [0, 0, 1, 1], [], []>} : vector<128x36xbf16>, vector<36x8xbf16>, vector<128x8xf32> -> vector<128x8xf32>
    %cst_3 = arith.constant dense<0.000000e+00> : vector<8xf32>
    %3 = vector.multi_reduction <add>, %2, %cst_3 [0] : vector<128x8xf32> to vector<8xf32>
    %4 = vector.shape_cast %3 : vector<8xf32> to vector<1x8xf32>
    %5 = vector.shape_cast %4 : vector<1x8xf32> to vector<1x1x8xf32>
    %c0_4 = arith.constant 0 : index
    %c0_5 = arith.constant 0 : index
    %c0_6 = arith.constant 0 : index
    %6 = vector.load %arg4[%c0_4, %c0_5, %c0_6] : memref<1x1x8xf32, #tpu.memory_space<vmem>>, vector<1x1x8xf32>
    tpu.vector_store %arg4[%c0_4, %c0_5, %c0_6], %5 {strides = array<i32>} : memref<1x1x8xf32, #tpu.memory_space<vmem>>, vector<1x1x8xf32>,
    %7 = arith.mulf %2, %2 : vector<128x8xf32>
    %cst_7 = arith.constant dense<0.000000e+00> : vector<8xf32>
    %8 = vector.multi_reduction <add>, %7, %cst_7 [0] : vector<128x8xf32> to vector<8xf32>
    %9 = vector.shape_cast %8 : vector<8xf32> to vector<1x8xf32>
    %10 = vector.shape_cast %9 : vector<1x8xf32> to vector<1x1x8xf32>
    %c0_8 = arith.constant 0 : index
    %c0_9 = arith.constant 0 : index
    %c0_10 = arith.constant 0 : index
    %11 = vector.load %arg5[%c0_8, %c0_9, %c0_10] : memref<1x1x8xf32, #tpu.memory_space<vmem>>, vector<1x1x8xf32>
    tpu.vector_store %arg5[%c0_8, %c0_9, %c0_10], %10 {strides = array<i32>} : memref<1x1x8xf32, #tpu.memory_space<vmem>>, vector<1x1x8xf32>,
    %12 = arith.truncf %2 : vector<128x8xf32> to vector<128x8xbf16>
    %c0_11 = arith.constant 0 : index
    %c0_12 = arith.constant 0 : index
    %13 = vector.load %arg3[%c0_11, %c0_12] : memref<128x8xbf16, #tpu.memory_space<vmem>>, vector<128x8xbf16>
    tpu.vector_store %arg3[%c0_11, %c0_12], %12 {strides = array<i32>} : memref<128x8xbf16, #tpu.memory_space<vmem>>, vector<128x8xbf16>,
    return
  }
  func.func @transform_0(%arg0: i32) -> (i32, i32) {
    %c0_i32 = arith.constant 0 : i32
    %c0_i32_0 = arith.constant 0 : i32
    return %arg0, %c0_i32 : i32, i32
  }
  func.func @transform_1(%arg0: i32) -> (i32, i32) {
    %c0_i32 = arith.constant 0 : i32
    %c0_i32_0 = arith.constant 0 : i32
    %c0_i32_1 = arith.constant 0 : i32
    return %c0_i32, %c0_i32_0 : i32, i32
  }
  func.func @transform_2(%arg0: i32) -> (i32, i32) {
    %c0_i32 = arith.constant 0 : i32
    %c0_i32_0 = arith.constant 0 : i32
    return %arg0, %c0_i32 : i32, i32
  }
  func.func @transform_3(%arg0: i32) -> (i32, i32, i32) {
    %c0_i32 = arith.constant 0 : i32
    %c0_i32_0 = arith.constant 0 : i32
    %c0_i32_1 = arith.constant 0 : i32
    return %arg0, %c0_i32, %c0_i32_0 : i32, i32, i32
  }
  func.func @transform_4(%arg0: i32) -> (i32, i32, i32) {
    %c0_i32 = arith.constant 0 : i32
    %c0_i32_0 = arith.constant 0 : i32
    %c0_i32_1 = arith.constant 0 : i32
    return %arg0, %c0_i32, %c0_i32_0 : i32, i32, i32
  }
}

</mosaic_0001>

<llo_original>
// kernel: tpu_custom_call.1
$region0: #{tpu_custom_call.1}
  #allocation0 [shape = 'u32[]', space=smem, size = 0x4, offset = 0x4, fixed_abs, tag = 'smem constant byte address 0x4 - core index']
  #allocation1 [shape = 'u32[72,128]{1,0:T(1,128)}', space=vmem, size = 0x9000, scoped, tag = 'internal scratch']
  %s0 = inlined_call_operand.vmem [shape: bf16[128,36], index: 0, kind: input, shape index: {}]
  %s1 = inlined_call_operand.vmem [shape: bf16[36,8], index: 1, kind: input, shape index: {}]
  %s2 = inlined_call_operand.vmem [shape: bf16[128,8], index: 2, kind: output, shape index: {0}]
  %s3 = inlined_call_operand.hbm [shape: f32[1,1,8], index: 3, kind: output, shape index: {1}]
  %s4 = inlined_call_operand.hbm [shape: f32[1,1,8], index: 4, kind: output, shape index: {2}]
  %5 = xla_tuple %s2, %s3, %s4
  %s6 = sld [smem:[#allocation0]]
  $region34: #{tpu_custom_call.1} parent=0
    _
  %s8 = ssub.s32 1, %s6
  %s9 = scalar_select 0, %s8, %s6
  $region1: #{tpu_custom_call.1} parent=0
    #allocation2 [shape = 'u8[512]{0}', space=vmem, size = 0x400, scoped, tag = 'output window, operand 1, single buffered']
    #allocation3 [shape = 's32[1]{0}', space=sflag, size = 0x4, scoped, tag = 'scoped memory for tpu_custom_call.1']
    #allocation4 [shape = 'u8[512]{0}', space=vmem, size = 0x400, scoped, tag = 'output window, operand 2, single buffered']
    #allocation5 [shape = 's32[1]{0}', space=sflag, size = 0x4, scoped, tag = 'scoped memory for tpu_custom_call.1']
    %10 = vsyncpa [#allocation3], 0
    %11 = vsyncpa [#allocation5], 0
    // Predicated region
    $region2: #{tpu_custom_call.1} parent=1 // pred_check
      _
    $region3: #{tpu_custom_call.1} parent=1 // pred_check_branch
      %13 = sbr.rel (0) target = $region5
    $region4: #{tpu_custom_call.1} parent=1 // pred_region
      _
    $region5: #{tpu_custom_call.1} parent=1 // pred_fallthru
      _
    // Predicated region
    $region6: #{tpu_custom_call.1} parent=1 // pred_check
      _
    $region7: #{tpu_custom_call.1} parent=1 // pred_check_branch
      %15 = sbr.rel (0) target = $region9
    $region8: #{tpu_custom_call.1} parent=1 // pred_region
      _
    $region9: #{tpu_custom_call.1} parent=1 // pred_fallthru
      _
    %v17 = vld [vmem:[%s0] sm:$0xf]
    %v18 = vld [vmem:[%s0 + $0x4] sm:$0xf]
    %v19 = vld [vmem:[%s0 + $0x8] sm:$0xf]
    %v20 = vld [vmem:[%s0 + $0xc] sm:$0xf]
    %v21 = vld [vmem:[%s0 + $0x10] sm:$0xf]
    %v22 = vld [vmem:[%s0 + $0x14] sm:$0xf]
    %v23 = vld [vmem:[%s0 + $0x18] sm:$0xf]
    %v24 = vld [vmem:[%s0 + $0x1c] sm:$0xf]
    %v25 = vld [vmem:[%s0 + $0x20] sm:$0xf]
    %v26 = vld [vmem:[%s0 + $0x24] sm:$0xf]
    %v27 = vld [vmem:[%s0 + $0x28] sm:$0xf]
    %v28 = vld [vmem:[%s0 + $0x2c] sm:$0xf]
    %v29 = vld [vmem:[%s0 + $0x30] sm:$0xf]
    %v30 = vld [vmem:[%s0 + $0x34] sm:$0xf]
    %v31 = vld [vmem:[%s0 + $0x38] sm:$0xf]
    %v32 = vld [vmem:[%s0 + $0x3c] sm:$0xf]
    %v33 = vld [vmem:[%s1] sm:$0xf]
    %v34 = vld [vmem:[%s1 + $0x4] sm:$0xf]
    %v35 = vld [vmem:[%s1 + $0x8] sm:$0xf]
    %v36 = vld [vmem:[%s1 + $0xc] sm:$0xf]
    %v37 = vld [vmem:[%s1 + $0x10] sm:$0x3]
    %v54 = vunpack.c.l.b16 %v17
    %v55 = vunpack.c.l.b16 %v18
    %v56 = vunpack.c.l.b16 %v19
    %v57 = vunpack.c.l.b16 %v20
    %v58 = vunpack.c.l.b16 %v21
    %v59 = vunpack.c.l.b16 %v22
    %v60 = vunpack.c.l.b16 %v23
    %v61 = vunpack.c.l.b16 %v24
    %v62 = vunpack.c.l.b16 %v25
    %v63 = vunpack.c.l.b16 %v26
    %v64 = vunpack.c.l.b16 %v27
    %v65 = vunpack.c.l.b16 %v28
    %v66 = vunpack.c.l.b16 %v29
    %v67 = vunpack.c.l.b16 %v30
    %v68 = vunpack.c.l.b16 %v31
    %v69 = vunpack.c.l.b16 %v32
    %v70 = vpack.c.b16 %v55, %v54
    %v71 = vpack.c.b16 %v57, %v56
    %v72 = vpack.c.b16 %v59, %v58
    %v73 = vpack.c.b16 %v61, %v60
    %v74 = vpack.c.b16 %v63, %v62
    %v75 = vpack.c.b16 %v65, %v64
    %v76 = vpack.c.b16 %v67, %v66
    %v77 = vpack.c.b16 %v69, %v68
    %v83 = vunpack.c.l.b16 %v33
    %v84 = vunpack.c.l.b16 %v34
    %v85 = vunpack.c.l.b16 %v35
    %v86 = vunpack.c.l.b16 %v36
    %v87 = vunpack.c.l.b16 %v37
    %v88 = vpack.c.b16 %v84, %v83
    %v89 = vpack.c.b16 %v86, %v85
    %v90 = vpack.c.b16 %v87, %v87
    %vm93 = vcmask 293888
    %v95 = vsel %vm93, %v70, 0
    %v98 = vsel %vm93, %v71, 0
    %v101 = vsel %vm93, %v72, 0
    %v104 = vsel %vm93, %v73, 0
    %v107 = vsel %vm93, %v74, 0
    %v110 = vsel %vm93, %v75, 0
    %v113 = vsel %vm93, %v76, 0
    %v116 = vsel %vm93, %v77, 0
    %vm118 = vcmask 1041408
    %v120 = vsel %vm118, %v90, 0
    %122 = vmatpush.bf16.msra.mxu0 0
    %123 = vmatpush.bf16.msra.mxu0 0
    %124 = vmatpush.bf16.msra.mxu0 0
    %125 = vmatpush.bf16.msra.mxu0 0
    %126 = vmatpush.bf16.msra.mxu0 0
    %127 = vmatpush.bf16.msra.mxu0 %v120
    %128 = vmatpush.bf16.msra.mxu0 %v89
    %129 = vmatpush.bf16.msra.mxu0 %v88
    %130 = vmatmul.bf16.gmra.mxu0 %v95
    %v131 = vpop.f32.mrf.mxu0
    %v132 = vadd.f32 0.0, %v131
    %v133 = vpop.f32.mrf.mxu0
    %v134 = vadd.f32 0.0, %v133
    %135 = vmatmul.bf16.gmra.mxu0 %v98
    %v136 = vpop.f32.mrf.mxu0
    %v137 = vadd.f32 0.0, %v136
    %v138 = vpop.f32.mrf.mxu0
    %v139 = vadd.f32 0.0, %v138
    %140 = vmatmul.bf16.gmra.mxu0 %v101
    %v141 = vpop.f32.mrf.mxu0
    %v142 = vadd.f32 0.0, %v141
    %v143 = vpop.f32.mrf.mxu0
    %v144 = vadd.f32 0.0, %v143
    %145 = vmatmul.bf16.gmra.mxu0 %v104
    %v146 = vpop.f32.mrf.mxu0
    %v147 = vadd.f32 0.0, %v146
    %v148 = vpop.f32.mrf.mxu0
    %v149 = vadd.f32 0.0, %v148
    %150 = vmatmul.bf16.gmra.mxu0 %v107
    %v151 = vpop.f32.mrf.mxu0
    %v152 = vadd.f32 0.0, %v151
    %v153 = vpop.f32.mrf.mxu0
    %v154 = vadd.f32 0.0, %v153
    %155 = vmatmul.bf16.gmra.mxu0 %v110
    %v156 = vpop.f32.mrf.mxu0
    %v157 = vadd.f32 0.0, %v156
    %v158 = vpop.f32.mrf.mxu0
    %v159 = vadd.f32 0.0, %v158
    %160 = vmatmul.bf16.gmra.mxu0 %v113
    %v161 = vpop.f32.mrf.mxu0
    %v162 = vadd.f32 0.0, %v161
    %v163 = vpop.f32.mrf.mxu0
    %v164 = vadd.f32 0.0, %v163
    %165 = vmatmul.bf16.gmra.mxu0 %v116
    %v166 = vpop.f32.mrf.mxu0
    %v167 = vadd.f32 0.0, %v166
    %v168 = vpop.f32.mrf.mxu0
    %v169 = vadd.f32 0.0, %v168
    %170 = vdwg.mxu0
    %vm171 = vcmask 64512
    %v172 = vsel %vm171, %v132, 0.0
    %v173 = vsel %vm171, %v134, 0.0
    %v174 = vadd.f32 %v172, %v173
    %v175 = vsel %vm171, %v137, 0.0
    %v176 = vadd.f32 %v174, %v175
    %v177 = vsel %vm171, %v139, 0.0
    %v178 = vadd.f32 %v176, %v177
    %v179 = vsel %vm171, %v142, 0.0
    %v180 = vadd.f32 %v178, %v179
    %v181 = vsel %vm171, %v144, 0.0
    %v182 = vadd.f32 %v180, %v181
    %v183 = vsel %vm171, %v147, 0.0
    %v184 = vadd.f32 %v182, %v183
    %v185 = vsel %vm171, %v149, 0.0
    %v186 = vadd.f32 %v184, %v185
    %v187 = vsel %vm171, %v152, 0.0
    %v188 = vadd.f32 %v186, %v187
    %v189 = vsel %vm171, %v154, 0.0
    %v190 = vadd.f32 %v188, %v189
    %v191 = vsel %vm171, %v157, 0.0
    %v192 = vadd.f32 %v190, %v191
    %v193 = vsel %vm171, %v159, 0.0
    %v194 = vadd.f32 %v192, %v193
    %v195 = vsel %vm171, %v162, 0.0
    %v196 = vadd.f32 %v194, %v195
    %v197 = vsel %vm171, %v164, 0.0
    %v198 = vadd.f32 %v196, %v197
    %v199 = vsel %vm171, %v167, 0.0
    %v200 = vadd.f32 %v198, %v199
    %v201 = vsel %vm171, %v169, 0.0
    %v202 = vadd.f32 %v200, %v201
    %v203 = vrot.slane %v202, 4
    %v204 = vadd.f32 %v202, %v203
    %v205 = vrot.slane %v204, 2
    %v206 = vadd.f32 %v204, %v205
    %v207 = vrot.slane %v206, 1
    %v208 = vadd.f32 %v206, %v207
    %vm209 = vcmask 57344
    %210 = vst.msk [vmem:[#allocation2] sm:$0x1] %vm209, %v208
    %v211 = vmul.f32 %v132, %v132
    %v212 = vmul.f32 %v134, %v134
    %v213 = vmul.f32 %v137, %v137
    %v214 = vmul.f32 %v139, %v139
    %v215 = vmul.f32 %v142, %v142
    %v216 = vmul.f32 %v144, %v144
    %v217 = vmul.f32 %v147, %v147
    %v218 = vmul.f32 %v149, %v149
    %v219 = vmul.f32 %v152, %v152
    %v220 = vmul.f32 %v154, %v154
    %v221 = vmul.f32 %v157, %v157
    %v222 = vmul.f32 %v159, %v159
    %v223 = vmul.f32 %v162, %v162
    %v224 = vmul.f32 %v164, %v164
    %v225 = vmul.f32 %v167, %v167
    %v226 = vmul.f32 %v169, %v169
    %v227 = vsel %vm171, %v211, 0.0
    %v228 = vsel %vm171, %v212, 0.0
    %v229 = vadd.f32 %v227, %v228
    %v230 = vsel %vm171, %v213, 0.0
    %v231 = vadd.f32 %v229, %v230
    %v232 = vsel %vm171, %v214, 0.0
    %v233 = vadd.f32 %v231, %v232
    %v234 = vsel %vm171, %v215, 0.0
    %v235 = vadd.f32 %v233, %v234
    %v236 = vsel %vm171, %v216, 0.0
    %v237 = vadd.f32 %v235, %v236
    %v238 = vsel %vm171, %v217, 0.0
    %v239 = vadd.f32 %v237, %v238
    %v240 = vsel %vm171, %v218, 0.0
    %v241 = vadd.f32 %v239, %v240
    %v242 = vsel %vm171, %v219, 0.0
    %v243 = vadd.f32 %v241, %v242
    %v244 = vsel %vm171, %v220, 0.0
    %v245 = vadd.f32 %v243, %v244
    %v246 = vsel %vm171, %v221, 0.0
    %v247 = vadd.f32 %v245, %v246
    %v248 = vsel %vm171, %v222, 0.0
    %v249 = vadd.f32 %v247, %v248
    %v250 = vsel %vm171, %v223, 0.0
    %v251 = vadd.f32 %v249, %v250
    %v252 = vsel %vm171, %v224, 0.0
    %v253 = vadd.f32 %v251, %v252
    %v254 = vsel %vm171, %v225, 0.0
    %v255 = vadd.f32 %v253, %v254
    %v256 = vsel %vm171, %v226, 0.0
    %v257 = vadd.f32 %v255, %v256
    %v258 = vrot.slane %v257, 4
    %v259 = vadd.f32 %v257, %v258
    %v260 = vrot.slane %v259, 2
    %v261 = vadd.f32 %v259, %v260
    %v262 = vrot.slane %v261, 1
    %v263 = vadd.f32 %v261, %v262
    %264 = vst.msk [vmem:[#allocation4] sm:$0x1] %vm209, %v263
    %v265 = vpack.c.bf16 %v132, %v132
    %v266 = vpack.c.bf16 %v134, %v134
    %v267 = vpack.c.bf16 %v137, %v137
    %v268 = vpack.c.bf16 %v139, %v139
    %v269 = vpack.c.bf16 %v142, %v142
    %v270 = vpack.c.bf16 %v144, %v144
    %v271 = vpack.c.bf16 %v147, %v147
    %v272 = vpack.c.bf16 %v149, %v149
    %v273 = vpack.c.bf16 %v152, %v152
    %v274 = vpack.c.bf16 %v154, %v154
    %v275 = vpack.c.bf16 %v157, %v157
    %v276 = vpack.c.bf16 %v159, %v159
    %v277 = vpack.c.bf16 %v162, %v162
    %v278 = vpack.c.bf16 %v164, %v164
    %v279 = vpack.c.bf16 %v167, %v167
    %v280 = vpack.c.bf16 %v169, %v169
    %vm281 = vcmask 60416
    %282 = vst.msk [vmem:[%s2] sm:$0xf] %vm281, %v265
    %283 = vst.msk [vmem:[%s2 + $0x4] sm:$0xf] %vm281, %v266
    %284 = vst.msk [vmem:[%s2 + $0x8] sm:$0xf] %vm281, %v267
    %285 = vst.msk [vmem:[%s2 + $0xc] sm:$0xf] %vm281, %v268
    %286 = vst.msk [vmem:[%s2 + $0x10] sm:$0xf] %vm281, %v269
    %287 = vst.msk [vmem:[%s2 + $0x14] sm:$0xf] %vm281, %v270
    %288 = vst.msk [vmem:[%s2 + $0x18] sm:$0xf] %vm281, %v271
    %289 = vst.msk [vmem:[%s2 + $0x1c] sm:$0xf] %vm281, %v272
    %290 = vst.msk [vmem:[%s2 + $0x20] sm:$0xf] %vm281, %v273
    %291 = vst.msk [vmem:[%s2 + $0x24] sm:$0xf] %vm281, %v274
    %292 = vst.msk [vmem:[%s2 + $0x28] sm:$0xf] %vm281, %v275
    %293 = vst.msk [vmem:[%s2 + $0x2c] sm:$0xf] %vm281, %v276
    %294 = vst.msk [vmem:[%s2 + $0x30] sm:$0xf] %vm281, %v277
    %295 = vst.msk [vmem:[%s2 + $0x34] sm:$0xf] %vm281, %v278
    %296 = vst.msk [vmem:[%s2 + $0x38] sm:$0xf] %vm281, %v279
    %297 = vst.msk [vmem:[%s2 + $0x3c] sm:$0xf] %vm281, %v280
    // Predicated region
    $region10: #{tpu_custom_call.1} parent=1 // pred_check
      _
    $region11: #{tpu_custom_call.1} parent=1 // pred_check_branch
      %299 = sbr.rel (0) target = $region13
    $region12: #{tpu_custom_call.1} parent=1 // pred_region
      _
    $region13: #{tpu_custom_call.1} parent=1 // pred_fallthru
      _
    // Predicated region
    $region14: #{tpu_custom_call.1} parent=1 // pred_check
      _
    $region15: #{tpu_custom_call.1} parent=1 // pred_check_branch
      %301 = sbr.rel (0) target = $region17
    $region16: #{tpu_custom_call.1} parent=1 // pred_region
      %303 = vsyncadd [#allocation3], 0
      %s305 = sshll.u32 [#allocation2], 4
      %s306 = int_to_ptr.vmem [resolvable:$true] %s305
      %s307 = sshll.u32 %s3, 4
      %s308 = int_to_ptr.hbm [resolvable:$true] %s307
      %310 = dma.vmem_to_hbm [thread:$0]  %s306, 16, %s308, [#allocation3]
    $region17: #{tpu_custom_call.1} parent=1 // pred_fallthru
      _
    // Predicated region
    $region18: #{tpu_custom_call.1} parent=1 // pred_check
      _
    $region19: #{tpu_custom_call.1} parent=1 // pred_check_branch
      %312 = sbr.rel (0) target = $region21
    $region20: #{tpu_custom_call.1} parent=1 // pred_region
      %314 = vsyncadd [#allocation5], 0
      %s316 = sshll.u32 [#allocation4], 4
      %s317 = int_to_ptr.vmem [resolvable:$true] %s316
      %s318 = sshll.u32 %s4, 4
      %s319 = int_to_ptr.hbm [resolvable:$true] %s318
      %321 = dma.vmem_to_hbm [thread:$0]  %s317, 16, %s319, [#allocation5]
    $region21: #{tpu_custom_call.1} parent=1 // pred_fallthru
      _
    // Predicated region
    $region22: #{tpu_custom_call.1} parent=1 // pred_check
      _
    $region23: #{tpu_custom_call.1} parent=1 // pred_check_branch
      %323 = sbr.rel (0) target = $region25
    $region24: #{tpu_custom_call.1} parent=1 // pred_region
      _
    $region25: #{tpu_custom_call.1} parent=1 // pred_fallthru
      _
    // Predicated region
    $region26: #{tpu_custom_call.1} parent=1 // pred_check
      _
    $region27: #{tpu_custom_call.1} parent=1 // pred_check_branch
      %325 = sbr.rel (0) target = $region29
    $region28: #{tpu_custom_call.1} parent=1 // pred_region
      %327 = dma.done [#allocation3], 16
    $region29: #{tpu_custom_call.1} parent=1 // pred_fallthru
      _
    // Predicated region
    $region30: #{tpu_custom_call.1} parent=1 // pred_check
      _
    $region31: #{tpu_custom_call.1} parent=1 // pred_check_branch
      %329 = sbr.rel (0) target = $region33
    $region32: #{tpu_custom_call.1} parent=1 // pred_region
      %331 = dma.done [#allocation5], 16
    $region33: #{tpu_custom_call.1} parent=1 // pred_fallthru
      _
    %332 = vsyncpa [#allocation3], 1
    %333 = vsyncpa [#allocation5], 1

</llo_original>
